<compile_context>
chip_gen: v6e
topology: v6e:2x2x1
jax: 0.10.0
libtpu: 0.0.40
codegen_flags: <defaults>
</compile_context>

<pallas_src>
import functools

import jax
import jax.numpy as jnp
from jax.experimental import pallas as pl
from jax.experimental.pallas import tpu as pltpu


def _round_up(x: int, m: int) -> int:
    return ((x + m - 1) // m) * m


def _pick_tile(dim: int, max_tile: int, gran: int) -> int:
    """Largest multiple-of-`gran` tile <= max_tile that divides `dim`
    (dim is already a multiple of gran)."""
    t = min(dim, max_tile)
    t -= t % gran
    while dim % t:
        t -= gran
    return t


def segment_sum_kernel(batch_ref, x_ref, agg_ref):
    """One grid step processes TN nodes.

    batch_ref : [1, TN]          int32 graph ids for this tile
    x_ref     : [TN, Cin1_p]     f32 augmented node features (ones column folded in)
    agg_ref   : [G_p, Cin1_p]    f32 output accumulator (same block every step)
    """
    step = pl.program_id(0)

    @pl.when(step == 0)
    def _init():
        agg_ref[...] = jnp.zeros_like(agg_ref)

    g_pad = agg_ref.shape[0]
    tn = x_ref.shape[0]

    # Per-tile one-hot: onehot[g, n] = (batch[n] == g), shape [G_p, TN].
    gids = jax.lax.broadcasted_iota(jnp.int32, (g_pad, tn), 0)
    onehot = (gids == batch_ref[...]).astype(jnp.float32)

    # Aggregate raw (augmented) features: G_p x TN x Cin1_p MACs on the MXU.
    agg_ref[...] += jnp.dot(onehot, x_ref[...],
                            preferred_element_type=jnp.float32)


def linear_kernel(a_ref, w_ref, o_ref):
    """Standard tiled matmul: o[i,j] += a[i,k] @ w[k,j] (f32 accumulate)."""
    @pl.when(pl.program_id(2) == 0)
    def _init():
        o_ref[...] = jnp.zeros_like(o_ref)

    o_ref[...] += jnp.dot(a_ref[...], w_ref[...],
                          preferred_element_type=jnp.float32)


@functools.partial(jax.jit, static_argnames=("num_graphs", "tile_n"))
def graph_aggregator(x, w, b, batch, num_graphs, tile_n=512):
    """x: [N, Cin] f32, w: [Cin, Cout] f32 (= torch weight.T), b: [Cout] f32,
    batch: [N] int graph ids in [0, num_graphs)."""
    n, cin = x.shape
    cout = w.shape[1]

    tn = tile_n
    cin1_pad = _round_up(cin + 1, 128)        # +1 for the folded-bias ones column
    cout_pad = _round_up(cout, 128)
    g_pad = _round_up(num_graphs, 8)
    n_pad = _round_up(max(n, 1), tn)

    # Augmented features: ones column at index cin (real rows only).
    x_aug = jnp.zeros((n_pad, cin1_pad), jnp.float32)
    x_aug = x_aug.at[:n, :cin].set(x.astype(jnp.float32))
    x_aug = x_aug.at[:n, cin].set(1.0)

    # Augmented weights: bias folded in as row cin.
    w_aug = jnp.zeros((cin1_pad, cout_pad), jnp.float32)
    w_aug = w_aug.at[:cin, :cout].set(w.astype(jnp.float32))
    w_aug = w_aug.at[cin, :cout].set(b.astype(jnp.float32))

    # Padded nodes get an out-of-range id -> their one-hot row is all zeros.
    batch_p = jnp.full((1, n_pad), g_pad, jnp.int32).at[0, :n].set(
        batch.astype(jnp.int32))

    # ---- Stage 1: streaming segment sum of augmented features ------------
    grid1 = (n_pad // tn,)

    # Explicit VMEM budget (review): agg (assume double-buffered output) +
    # double-buffered x/batch tiles, with headroom; clamped to be valid on
    # v5e / v6e / v7x.
    vmem_need = (2 * g_pad * cin1_pad * 4
                 + 2 * tn * cin1_pad * 4
                 + 2 * tn * 4)
    vmem_limit = int(min(max(2 * vmem_need, 32 << 20), 48 << 20))

    cost1 = pl.CostEstimate(
        flops=2 * g_pad * n_pad * cin1_pad,
        transcendentals=0,
        bytes_accessed=(x_aug.size + batch_p.size + g_pad * cin1_pad) * 4,
    )

    agg = pl.pallas_call(
        segment_sum_kernel,
        out_shape=jax.ShapeDtypeStruct((g_pad, cin1_pad), jnp.float32),
        grid_spec=pltpu.PrefetchScalarGridSpec(
            num_scalar_prefetch=0,
            grid=grid1,
            in_specs=[
                pl.BlockSpec((1, tn), lambda i: (0, i)),           # batch ids
                pl.BlockSpec((tn, cin1_pad), lambda i: (i, 0)),    # x tile
            ],
            out_specs=pl.BlockSpec((g_pad, cin1_pad), lambda i: (0, 0)),
        ),
        compiler_params=pltpu.CompilerParams(
            dimension_semantics=("arbitrary",),   # N axis is a reduction
            vmem_limit_bytes=vmem_limit,
        ),
        cost_estimate=cost1,
    )(batch_p, x_aug)

    # ---- Stage 2: finalize GEMM  out = agg @ w_aug ------------------------
    tm2 = _pick_tile(g_pad, 256, 8)
    tn2 = _pick_tile(cout_pad, 256, 128)
    tk2 = _pick_tile(cin1_pad, 512, 128)
    grid2 = (g_pad // tm2, cout_pad // tn2, cin1_pad // tk2)

    out_p = pl.pallas_call(
        linear_kernel,
        out_shape=jax.ShapeDtypeStruct((g_pad, cout_pad), jnp.float32),
        grid_spec=pltpu.PrefetchScalarGridSpec(
            num_scalar_prefetch=0,
            grid=grid2,
            in_specs=[
                pl.BlockSpec((tm2, tk2), lambda i, j, k: (i, k)),
                pl.BlockSpec((tk2, tn2), lambda i, j, k: (k, j)),
            ],
            out_specs=pl.BlockSpec((tm2, tn2), lambda i, j, k: (i, j)),
        ),
        compiler_params=pltpu.CompilerParams(
            dimension_semantics=("parallel", "parallel", "arbitrary"),
        ),
        cost_estimate=pl.CostEstimate(
            flops=2 * g_pad * cin1_pad * cout_pad,
            transcendentals=0,
            bytes_accessed=(g_pad * cin1_pad + cin1_pad * cout_pad
                            + g_pad * cout_pad) * 4,
        ),
    )(agg, w_aug)

    return out_p[:num_graphs, :cout]


def _reference(x, w, b, batch, num_graphs):
    h = x @ w + b[None, :]
    return jax.ops.segment_sum(h, batch, num_segments=num_graphs)


if __name__ == "__main__":
    key = jax.random.PRNGKey(0)
    k_x, k_w, k_b, k_batch = jax.random.split(key, 4)

    N, Cin, Cout, G = 16, 8, 32, 4

    x = jax.random.normal(k_x, (N, Cin), dtype=jnp.float32)

    # torch nn.Linear default init: U(-1/sqrt(in), 1/sqrt(in)) for W and b.
    bound = 1.0 / jnp.sqrt(jnp.float32(Cin))
    w = jax.random.uniform(k_w, (Cin, Cout), jnp.float32, -bound, bound)
    b = jax.random.uniform(k_b, (Cout,), jnp.float32, -bound, bound)

    # Graph assignment per node (edge_index is unused by the forward pass).
    batch = jax.random.randint(k_batch, (N,), 0, G, dtype=jnp.int32)

    out = graph_aggregator(x, w, b, batch, G)
    out = jax.block_until_ready(out)

    ref = _reference(x, w, b, batch, G)
    assert out.shape == (G, Cout)
    assert jnp.allclose(out, ref, atol=1e-5, rtol=1e-5)

    print("KERNEL_OK")
</pallas_src>

<mosaic_0001>
module attributes {stable_mosaic.version = 11 : i64} {
  func.func @segment_sum_kernel(%arg0: i32, %arg1: memref<1x512xi32, #tpu.memory_space<vmem>>, %arg2: memref<512x128xf32, #tpu.memory_space<vmem>>, %arg3: memref<8x128xf32, #tpu.memory_space<vmem>>) attributes {dimension_semantics = [#tpu.dimension_semantics<arbitrary>], iteration_bounds = array<i64: 1>, scalar_prefetch = 0 : i64, scratch_operands = 0 : i64, tpu.core_type = #tpu.core_type<tc>, window_params = [{transform_indices = @transform_0, window_bounds = array<i64: 1, 512>}, {transform_indices = @transform_1, window_bounds = array<i64: 512, 128>}, {pipeline_mode = #tpu.pipeline_mode<synchronous>, transform_indices = @transform_2, window_bounds = array<i64: 8, 128>}]} {
    %c0_i32 = arith.constant 0 : i32
    %0 = arith.cmpi eq, %arg0, %c0_i32 : i32
    %1 = arith.extui %0 : i1 to i32
    %c0_i32_0 = arith.constant 0 : i32
    %2 = arith.cmpi ne, %1, %c0_i32_0 : i32
    scf.if %2 {
      %cst_8 = arith.constant 0.000000e+00 : f32
      %14 = vector.broadcast %cst_8 : f32 to vector<8x128xf32>
      %c0_9 = arith.constant 0 : index
      %c0_10 = arith.constant 0 : index
      %15 = vector.load %arg3[%c0_9, %c0_10] : memref<8x128xf32, #tpu.memory_space<vmem>>, vector<8x128xf32>
      tpu.vector_store %arg3[%c0_9, %c0_10], %14 {strides = array<i32>} : memref<8x128xf32, #tpu.memory_space<vmem>>, vector<8x128xf32>,
    } else {
    }
    %3 = tpu.iota {dimensions = array<i32: 0>} : vector<8x512xi32>
    %c0 = arith.constant 0 : index
    %c0_1 = arith.constant 0 : index
    %4 = vector.load %arg1[%c0, %c0_1] : memref<1x512xi32, #tpu.memory_space<vmem>>, vector<1x512xi32>
    %5 = vector.broadcast %4 : vector<1x512xi32> to vector<8x512xi32>
    %6 = arith.cmpi eq, %3, %5 : vector<8x512xi32>
    %7 = arith.extui %6 : vector<8x512xi1> to vector<8x512xi32>
    %8 = arith.sitofp %7 : vector<8x512xi32> to vector<8x512xf32>
    %c0_2 = arith.constant 0 : index
    %c0_3 = arith.constant 0 : index
    %9 = vector.load %arg3[%c0_2, %c0_3] : memref<8x128xf32, #tpu.memory_space<vmem>>, vector<8x128xf32>
    %c0_4 = arith.constant 0 : index
    %c0_5 = arith.constant 0 : index
    %10 = vector.load %arg2[%c0_4, %c0_5] : memref<512x128xf32, #tpu.memory_space<vmem>>, vector<512x128xf32>
    %cst = arith.constant dense<0.000000e+00> : vector<8x128xf32>
    %11 = tpu.matmul %8, %10, %cst {dimension_numbers = #tpu.dot_dimension_numbers<[1], [0], [0], [1], [0, 0, 1, 1], [], []>} : vector<8x512xf32>, vector<512x128xf32>, vector<8x128xf32> -> vector<8x128xf32>
    %12 = arith.addf %9, %11 : vector<8x128xf32>
    %c0_6 = arith.constant 0 : index
    %c0_7 = arith.constant 0 : index
    %13 = vector.load %arg3[%c0_6, %c0_7] : memref<8x128xf32, #tpu.memory_space<vmem>>, vector<8x128xf32>
    tpu.vector_store %arg3[%c0_6, %c0_7], %12 {strides = array<i32>} : memref<8x128xf32, #tpu.memory_space<vmem>>, vector<8x128xf32>,
    return
  }
  func.func @transform_0(%arg0: i32) -> (i32, i32) {
    %c0_i32 = arith.constant 0 : i32
    %c0_i32_0 = arith.constant 0 : i32
    return %c0_i32, %arg0 : i32, i32
  }
  func.func @transform_1(%arg0: i32) -> (i32, i32) {
    %c0_i32 = arith.constant 0 : i32
    %c0_i32_0 = arith.constant 0 : i32
    return %arg0, %c0_i32 : i32, i32
  }
  func.func @transform_2(%arg0: i32) -> (i32, i32) {
    %c0_i32 = arith.constant 0 : i32
    %c0_i32_0 = arith.constant 0 : i32
    %c0_i32_1 = arith.constant 0 : i32
    return %c0_i32, %c0_i32_0 : i32, i32
  }
}

module attributes {stable_mosaic.version = 11 : i64} {
  func.func @linear_kernel(%arg0: i32, %arg1: i32, %arg2: i32, %arg3: memref<8x128xf32, #tpu.memory_space<vmem>>, %arg4: memref<128x128xf32, #tpu.memory_space<vmem>>, %arg5: memref<8x128xf32, #tpu.memory_space<vmem>>) attributes {dimension_semantics = [#tpu.dimension_semantics<parallel>, #tpu.dimension_semantics<parallel>, #tpu.dimension_semantics<arbitrary>], iteration_bounds = array<i64: 1, 1, 1>, scalar_prefetch = 0 : i64, scratch_operands = 0 : i64, tpu.core_type = #tpu.core_type<tc>, window_params = [{transform_indices = @transform_0, window_bounds = array<i64: 8, 128>}, {transform_indices = @transform_1, window_bounds = array<i64: 128, 128>}, {transform_indices = @transform_2, window_bounds = array<i64: 8, 128>}]} {
    %c0_i32 = arith.constant 0 : i32
    %0 = arith.cmpi eq, %arg2, %c0_i32 : i32
    %1 = arith.extui %0 : i1 to i32
    %c0_i32_0 = arith.constant 0 : i32
    %2 = arith.cmpi ne, %1, %c0_i32_0 : i32
    scf.if %2 {
      %cst_8 = arith.constant 0.000000e+00 : f32
      %9 = vector.broadcast %cst_8 : f32 to vector<8x128xf32>
      %c0_9 = arith.constant 0 : index
      %c0_10 = arith.constant 0 : index
      %10 = vector.load %arg5[%c0_9, %c0_10] : memref<8x128xf32, #tpu.memory_space<vmem>>, vector<8x128xf32>
      tpu.vector_store %arg5[%c0_9, %c0_10], %9 {strides = array<i32>} : memref<8x128xf32, #tpu.memory_space<vmem>>, vector<8x128xf32>,
    } else {
    }
    %c0 = arith.constant 0 : index
    %c0_1 = arith.constant 0 : index
    %3 = vector.load %arg5[%c0, %c0_1] : memref<8x128xf32, #tpu.memory_space<vmem>>, vector<8x128xf32>
    %c0_2 = arith.constant 0 : index
    %c0_3 = arith.constant 0 : index
    %4 = vector.load %arg3[%c0_2, %c0_3] : memref<8x128xf32, #tpu.memory_space<vmem>>, vector<8x128xf32>
    %c0_4 = arith.constant 0 : index
    %c0_5 = arith.constant 0 : index
    %5 = vector.load %arg4[%c0_4, %c0_5] : memref<128x128xf32, #tpu.memory_space<vmem>>, vector<128x128xf32>
    %cst = arith.constant dense<0.000000e+00> : vector<8x128xf32>
    %6 = tpu.matmul %4, %5, %cst {dimension_numbers = #tpu.dot_dimension_numbers<[1], [0], [0], [1], [0, 0, 1, 1], [], []>} : vector<8x128xf32>, vector<128x128xf32>, vector<8x128xf32> -> vector<8x128xf32>
    %7 = arith.addf %3, %6 : vector<8x128xf32>
    %c0_6 = arith.constant 0 : index
    %c0_7 = arith.constant 0 : index
    %8 = vector.load %arg5[%c0_6, %c0_7] : memref<8x128xf32, #tpu.memory_space<vmem>>, vector<8x128xf32>
    tpu.vector_store %arg5[%c0_6, %c0_7], %7 {strides = array<i32>} : memref<8x128xf32, #tpu.memory_space<vmem>>, vector<8x128xf32>,
    return
  }
  func.func @transform_0(%arg0: i32, %arg1: i32, %arg2: i32) -> (i32, i32) {
    %c0_i32 = arith.constant 0 : i32
    return %arg0, %arg2 : i32, i32
  }
  func.func @transform_1(%arg0: i32, %arg1: i32, %arg2: i32) -> (i32, i32) {
    %c0_i32 = arith.constant 0 : i32
    return %arg2, %arg1 : i32, i32
  }
  func.func @transform_2(%arg0: i32, %arg1: i32, %arg2: i32) -> (i32, i32) {
    %c0_i32 = arith.constant 0 : i32
    return %arg0, %arg1 : i32, i32
  }
}

</mosaic_0001>

<llo_original>
// kernel: graph_aggregator.3
$region0: #{graph_aggregator.3}
  #allocation0 [shape = 'u32[]', space=smem, size = 0x4, offset = 0x4, fixed_abs, tag = 'smem constant byte address 0x4 - core index']
  #allocation1 [shape = 'u32[144,128]{1,0:T(1,128)}', space=vmem, size = 0x12000, scoped, tag = 'internal scratch']
  %s0 = inlined_call_operand.vmem [shape: f32[8,128], index: 0, kind: input, shape index: {}]
  %s1 = inlined_call_operand.vmem [shape: f32[128,128], index: 1, kind: input, shape index: {}]
  %s2 = inlined_call_operand.vmem [shape: f32[8,128], index: 2, kind: output, shape index: {}]
  %s3 = sld [smem:[#allocation0]]
  $region22: #{graph_aggregator.3} parent=0
    _
  %s5 = ssub.s32 1, %s3
  %s6 = scalar_select 0, %s5, %s3
  // Predicated region
  $region2: #{graph_aggregator.3} parent=0 // pred_check
    _
  $region3: #{graph_aggregator.3} parent=0 // pred_check_branch
    %8 = sbr.rel (0) target = $region5
  $region4: #{graph_aggregator.3} parent=0 // pred_region
    _
  $region5: #{graph_aggregator.3} parent=0 // pred_fallthru
    _
  // Predicated region
  $region6: #{graph_aggregator.3} parent=0 // pred_check
    _
  $region7: #{graph_aggregator.3} parent=0 // pred_check_branch
    %10 = sbr.rel (0) target = $region9
  $region8: #{graph_aggregator.3} parent=0 // pred_region
    _
  $region9: #{graph_aggregator.3} parent=0 // pred_fallthru
    _
  %p11 = scmp.eq.s32.totalorder 0, 0
  // Predicated region
  $region10: #{graph_aggregator.3} parent=0 // pred_check
    %p12 = pneg %p11
  $region11: #{graph_aggregator.3} parent=0 // pred_check_branch
    %14 = sbr.rel (%p12) target = $region13
  $region12: #{graph_aggregator.3} parent=0 // pred_region
    %15 = vst [vmem:[%s2] sm:$0xff] 0.0
  $region13: #{graph_aggregator.3} parent=0 // pred_fallthru
    _
  %v16 = vld [vmem:[%s2] sm:$0xff]
  %v17 = vld [vmem:[%s0] sm:$0xff]
  %v18 = vld [vmem:[%s1] sm:$0xff]
  %v19 = vld [vmem:[%s1 + $0x8] sm:$0xff]
  %v20 = vld [vmem:[%s1 + $0x10] sm:$0xff]
  %v21 = vld [vmem:[%s1 + $0x18] sm:$0xff]
  %v22 = vld [vmem:[%s1 + $0x20] sm:$0xff]
  %v23 = vld [vmem:[%s1 + $0x28] sm:$0xff]
  %v24 = vld [vmem:[%s1 + $0x30] sm:$0xff]
  %v25 = vld [vmem:[%s1 + $0x38] sm:$0xff]
  %v26 = vld [vmem:[%s1 + $0x40] sm:$0xff]
  %v27 = vld [vmem:[%s1 + $0x48] sm:$0xff]
  %v28 = vld [vmem:[%s1 + $0x50] sm:$0xff]
  %v29 = vld [vmem:[%s1 + $0x58] sm:$0xff]
  %v30 = vld [vmem:[%s1 + $0x60] sm:$0xff]
  %v31 = vld [vmem:[%s1 + $0x68] sm:$0xff]
  %v32 = vld [vmem:[%s1 + $0x70] sm:$0xff]
  %v33 = vld [vmem:[%s1 + $0x78] sm:$0xff]
  %34 = vmatprep.subr.mxu0 0.0
  %35 = vmatpush1.msra.mxu0 %v33
  %36 = vmatprep.subr.mxu0 0.0
  %37 = vmatpush1.msra.mxu0 %v32
  %38 = vmatprep.subr.mxu0 0.0
  %39 = vmatpush1.msra.mxu0 %v31
  %40 = vmatprep.subr.mxu0 0.0
  %41 = vmatpush1.msra.mxu0 %v30
  %42 = vmatprep.subr.mxu0 0.0
  %43 = vmatpush1.msra.mxu0 %v29
  %44 = vmatprep.subr.mxu0 0.0
  %45 = vmatpush1.msra.mxu0 %v28
  %46 = vmatprep.subr.mxu0 0.0
  %47 = vmatpush1.msra.mxu0 %v27
  %48 = vmatprep.subr.mxu0 0.0
  %49 = vmatpush1.msra.mxu0 %v26
  %50 = vmatprep.subr.mxu0 0.0
  %51 = vmatpush1.msra.mxu0 %v25
  %52 = vmatprep.subr.mxu0 0.0
  %53 = vmatpush1.msra.mxu0 %v24
  %54 = vmatprep.subr.mxu0 0.0
  %55 = vmatpush1.msra.mxu0 %v23
  %56 = vmatprep.subr.mxu0 0.0
  %57 = vmatpush1.msra.mxu0 %v22
  %58 = vmatprep.subr.mxu0 0.0
  %59 = vmatpush1.msra.mxu0 %v21
  %60 = vmatprep.subr.mxu0 0.0
  %61 = vmatpush1.msra.mxu0 %v20
  %62 = vmatprep.subr.mxu0 0.0
  %63 = vmatpush1.msra.mxu0 %v19
  %64 = vmatprep.subr.mxu0 0.0
  %65 = vmatpush1.msra.mxu0 %v18
  %66 = vmatprep.subr.mxu0 0.0
  %67 = vmatpush2.msra.mxu0 0.0
  %68 = vmatprep.subr.mxu0 0.0
  %69 = vmatpush2.msra.mxu0 0.0
  %70 = vmatprep.subr.mxu0 0.0
  %71 = vmatpush2.msra.mxu0 0.0
  %72 = vmatprep.subr.mxu0 0.0
  %73 = vmatpush2.msra.mxu0 0.0
  %74 = vmatprep.subr.mxu0 0.0
  %75 = vmatpush2.msra.mxu0 0.0
  %76 = vmatprep.subr.mxu0 0.0
  %77 = vmatpush2.msra.mxu0 0.0
  %78 = vmatprep.subr.mxu0 0.0
  %79 = vmatpush2.msra.mxu0 0.0
  %80 = vmatprep.subr.mxu0 0.0
  %81 = vmatpush2.msra.mxu0 0.0
  %82 = vmatprep.subr.mxu0 0.0
  %83 = vmatpush2.msra.mxu0 0.0
  %84 = vmatprep.subr.mxu0 0.0
  %85 = vmatpush2.msra.mxu0 0.0
  %86 = vmatprep.subr.mxu0 0.0
  %87 = vmatpush2.msra.mxu0 0.0
  %88 = vmatprep.subr.mxu0 0.0
  %89 = vmatpush2.msra.mxu0 0.0
  %90 = vmatprep.subr.mxu0 0.0
  %91 = vmatpush2.msra.mxu0 0.0
  %92 = vmatprep.subr.mxu0 0.0
  %93 = vmatpush2.msra.mxu0 0.0
  %94 = vmatprep.subr.mxu0 0.0
  %95 = vmatpush2.msra.mxu0 0.0
  %96 = vmatprep.subr.mxu0 0.0
  %97 = vmatpush2.msra.mxu0 0.0
  %98 = vmatprep.mubr.f32.mxu0 0.0
  %99 = vmatmul.mubr.f32.gmra.mxu0 %v17
  %v100 = vpop.f32.mrf.mxu0
  %v101 = vadd.f32 0.0, %v100
  %v102 = vpop.f32.mrf.mxu0
  %103 = vdwg.mxu0
  %v104 = vadd.f32 %v16, %v101
  %105 = vst [vmem:[%s2] sm:$0xff] %v104
  // Predicated region
  $region14: #{graph_aggregator.3} parent=0 // pred_check
    _
  $region15: #{graph_aggregator.3} parent=0 // pred_check_branch
    %107 = sbr.rel (0) target = $region17
  $region16: #{graph_aggregator.3} parent=0 // pred_region
    _
  $region17: #{graph_aggregator.3} parent=0 // pred_fallthru
    _
  // Predicated region
  $region18: #{graph_aggregator.3} parent=0 // pred_check
    _
  $region19: #{graph_aggregator.3} parent=0 // pred_check_branch
    %109 = sbr.rel (0) target = $region21
  $region20: #{graph_aggregator.3} parent=0 // pred_region
    _
  $region21: #{graph_aggregator.3} parent=0 // pred_fallthru
    _

// kernel: graph_aggregator.2
$region0: #{graph_aggregator.2}
  #allocation0 [shape = 'u32[]', space=smem, size = 0x4, offset = 0x4, fixed_abs, tag = 'smem constant byte address 0x4 - core index']
  #allocation1 [shape = 'u32[144,128]{1,0:T(1,128)}', space=vmem, size = 0x12000, scoped, tag = 'internal scratch']
  %s0 = inlined_call_operand.vmem [shape: s32[1,512], index: 0, kind: input, shape index: {}]
  %s1 = inlined_call_operand.vmem [shape: f32[512,128], index: 1, kind: input, shape index: {}]
  %s2 = inlined_call_operand.vmem [shape: f32[8,128], index: 2, kind: output, shape index: {}]
  %s3 = sld [smem:[#allocation0]]
  $region22: #{graph_aggregator.2} parent=0
    _
  %s5 = ssub.s32 1, %s3
  %s6 = scalar_select 0, %s5, %s3
  // Predicated region
  $region2: #{graph_aggregator.2} parent=0 // pred_check
    _
  $region3: #{graph_aggregator.2} parent=0 // pred_check_branch
    %8 = sbr.rel (0) target = $region5
  $region4: #{graph_aggregator.2} parent=0 // pred_region
    _
  $region5: #{graph_aggregator.2} parent=0 // pred_fallthru
    _
  // Predicated region
  $region6: #{graph_aggregator.2} parent=0 // pred_check
    _
  $region7: #{graph_aggregator.2} parent=0 // pred_check_branch
    %10 = sbr.rel (0) target = $region9
  $region8: #{graph_aggregator.2} parent=0 // pred_region
    _
  $region9: #{graph_aggregator.2} parent=0 // pred_fallthru
    _
  %p11 = scmp.eq.s32.totalorder 0, 0
  // Predicated region
  $region10: #{graph_aggregator.2} parent=0 // pred_check
    %p12 = pneg %p11
  $region11: #{graph_aggregator.2} parent=0 // pred_check_branch
    %14 = sbr.rel (%p12) target = $region13
  $region12: #{graph_aggregator.2} parent=0 // pred_region
    %15 = vst [vmem:[%s2] sm:$0xff] 0.0
  $region13: #{graph_aggregator.2} parent=0 // pred_fallthru
    _
  %v16 = vlaneseq
  %v17 = vshrl.u32 %v16, 7
  %v18 = vld [vmem:[%s0] sm:$0xf]
  %v19 = vlaneseq
  %v20 = vshrl.u32 %v19, 7
  %v21 = vsub.s32 0, %v20
  %v22 = vrot.slane %v18, %v21
  %v23 = vlaneseq
  %v24 = vshrl.u32 %v23, 7
  %v25 = vsub.s32 1, %v24
  %v26 = vrot.slane %v18, %v25
  %v27 = vlaneseq
  %v28 = vshrl.u32 %v27, 7
  %v29 = vsub.s32 2, %v28
  %v30 = vrot.slane %v18, %v29
  %v31 = vlaneseq
  %v32 = vshrl.u32 %v31, 7
  %v33 = vsub.s32 3, %v32
  %v34 = vrot.slane %v18, %v33
  %vm35 = vcmp.eq.s32.totalorder %v17, %v22
  %vm36 = vcmp.eq.s32.totalorder %v17, %v26
  %vm37 = vcmp.eq.s32.totalorder %v17, %v30
  %vm38 = vcmp.eq.s32.totalorder %v17, %v34
  %v39 = vsel %vm35, 1, 0
  %v40 = vsel %vm36, 1, 0
  %v41 = vsel %vm37, 1, 0
  %v42 = vsel %vm38, 1, 0
  %v43 = vcvt.s32.f32 %v39
  %v44 = vcvt.s32.f32 %v40
  %v45 = vcvt.s32.f32 %v41
  %v46 = vcvt.s32.f32 %v42
  %v47 = vld [vmem:[%s2] sm:$0xff]
  %v48 = vld [vmem:[%s1] sm:$0xff]
  %v49 = vld [vmem:[%s1 + $0x8] sm:$0xff]
  %v50 = vld [vmem:[%s1 + $0x10] sm:$0xff]
  %v51 = vld [vmem:[%s1 + $0x18] sm:$0xff]
  %v52 = vld [vmem:[%s1 + $0x20] sm:$0xff]
  %v53 = vld [vmem:[%s1 + $0x28] sm:$0xff]
  %v54 = vld [vmem:[%s1 + $0x30] sm:$0xff]
  %v55 = vld [vmem:[%s1 + $0x38] sm:$0xff]
  %v56 = vld [vmem:[%s1 + $0x40] sm:$0xff]
  %v57 = vld [vmem:[%s1 + $0x48] sm:$0xff]
  %v58 = vld [vmem:[%s1 + $0x50] sm:$0xff]
  %v59 = vld [vmem:[%s1 + $0x58] sm:$0xff]
  %v60 = vld [vmem:[%s1 + $0x60] sm:$0xff]
  %v61 = vld [vmem:[%s1 + $0x68] sm:$0xff]
  %v62 = vld [vmem:[%s1 + $0x70] sm:$0xff]
  %v63 = vld [vmem:[%s1 + $0x78] sm:$0xff]
  %v64 = vld [vmem:[%s1 + $0x80] sm:$0xff]
  %v65 = vld [vmem:[%s1 + $0x88] sm:$0xff]
  %v66 = vld [vmem:[%s1 + $0x90] sm:$0xff]
  %v67 = vld [vmem:[%s1 + $0x98] sm:$0xff]
  %v68 = vld [vmem:[%s1 + $0xa0] sm:$0xff]
  %v69 = vld [vmem:[%s1 + $0xa8] sm:$0xff]
  %v70 = vld [vmem:[%s1 + $0xb0] sm:$0xff]
  %v71 = vld [vmem:[%s1 + $0xb8] sm:$0xff]
  %v72 = vld [vmem:[%s1 + $0xc0] sm:$0xff]
  %v73 = vld [vmem:[%s1 + $0xc8] sm:$0xff]
  %v74 = vld [vmem:[%s1 + $0xd0] sm:$0xff]
  %v75 = vld [vmem:[%s1 + $0xd8] sm:$0xff]
  %v76 = vld [vmem:[%s1 + $0xe0] sm:$0xff]
  %v77 = vld [vmem:[%s1 + $0xe8] sm:$0xff]
  %v78 = vld [vmem:[%s1 + $0xf0] sm:$0xff]
  %v79 = vld [vmem:[%s1 + $0xf8] sm:$0xff]
  %v80 = vld [vmem:[%s1 + $0x100] sm:$0xff]
  %v81 = vld [vmem:[%s1 + $0x108] sm:$0xff]
  %v82 = vld [vmem:[%s1 + $0x110] sm:$0xff]
  %v83 = vld [vmem:[%s1 + $0x118] sm:$0xff]
  %v84 = vld [vmem:[%s1 + $0x120] sm:$0xff]
  %v85 = vld [vmem:[%s1 + $0x128] sm:$0xff]
  %v86 = vld [vmem:[%s1 + $0x130] sm:$0xff]
  %v87 = vld [vmem:[%s1 + $0x138] sm:$0xff]
  %v88 = vld [vmem:[%s1 + $0x140] sm:$0xff]
  %v89 = vld [vmem:[%s1 + $0x148] sm:$0xff]
  %v90 = vld [vmem:[%s1 + $0x150] sm:$0xff]
  %v91 = vld [vmem:[%s1 + $0x158] sm:$0xff]
  %v92 = vld [vmem:[%s1 + $0x160] sm:$0xff]
  %v93 = vld [vmem:[%s1 + $0x168] sm:$0xff]
  %v94 = vld [vmem:[%s1 + $0x170] sm:$0xff]
  %v95 = vld [vmem:[%s1 + $0x178] sm:$0xff]
  %v96 = vld [vmem:[%s1 + $0x180] sm:$0xff]
  %v97 = vld [vmem:[%s1 + $0x188] sm:$0xff]
  %v98 = vld [vmem:[%s1 + $0x190] sm:$0xff]
  %v99 = vld [vmem:[%s1 + $0x198] sm:$0xff]
  %v100 = vld [vmem:[%s1 + $0x1a0] sm:$0xff]
  %v101 = vld [vmem:[%s1 + $0x1a8] sm:$0xff]
  %v102 = vld [vmem:[%s1 + $0x1b0] sm:$0xff]
  %v103 = vld [vmem:[%s1 + $0x1b8] sm:$0xff]
  %v104 = vld [vmem:[%s1 + $0x1c0] sm:$0xff]
  %v105 = vld [vmem:[%s1 + $0x1c8] sm:$0xff]
  %v106 = vld [vmem:[%s1 + $0x1d0] sm:$0xff]
  %v107 = vld [vmem:[%s1 + $0x1d8] sm:$0xff]
  %v108 = vld [vmem:[%s1 + $0x1e0] sm:$0xff]
  %v109 = vld [vmem:[%s1 + $0x1e8] sm:$0xff]
  %v110 = vld [vmem:[%s1 + $0x1f0] sm:$0xff]
  %v111 = vld [vmem:[%s1 + $0x1f8] sm:$0xff]
  %112 = vmatprep.subr.mxu0 0.0
  %113 = vmatpush1.msra.mxu0 %v63
  %114 = vmatprep.subr.mxu0 0.0
  %115 = vmatpush1.msra.mxu0 %v62
  %116 = vmatprep.subr.mxu0 0.0
  %117 = vmatpush1.msra.mxu0 %v61
  %118 = vmatprep.subr.mxu0 0.0
  %119 = vmatpush1.msra.mxu0 %v60
  %120 = vmatprep.subr.mxu0 0.0
  %121 = vmatpush1.msra.mxu0 %v59
  %122 = vmatprep.subr.mxu0 0.0
  %123 = vmatpush1.msra.mxu0 %v58
  %124 = vmatprep.subr.mxu0 0.0
  %125 = vmatpush1.msra.mxu0 %v57
  %126 = vmatprep.subr.mxu0 0.0
  %127 = vmatpush1.msra.mxu0 %v56
  %128 = vmatprep.subr.mxu0 0.0
  %129 = vmatpush1.msra.mxu0 %v55
  %130 = vmatprep.subr.mxu0 0.0
  %131 = vmatpush1.msra.mxu0 %v54
  %132 = vmatprep.subr.mxu0 0.0
  %133 = vmatpush1.msra.mxu0 %v53
  %134 = vmatprep.subr.mxu0 0.0
  %135 = vmatpush1.msra.mxu0 %v52
  %136 = vmatprep.subr.mxu0 0.0
  %137 = vmatpush1.msra.mxu0 %v51
  %138 = vmatprep.subr.mxu0 0.0
  %139 = vmatpush1.msra.mxu0 %v50
  %140 = vmatprep.subr.mxu0 0.0
  %141 = vmatpush1.msra.mxu0 %v49
  %142 = vmatprep.subr.mxu0 0.0
  %143 = vmatpush1.msra.mxu0 %v48
  %144 = vmatprep.subr.mxu0 0.0
  %145 = vmatpush2.msra.mxu0 %v79
  %146 = vmatprep.subr.mxu0 0.0
  %147 = vmatpush2.msra.mxu0 %v78
  %148 = vmatprep.subr.mxu0 0.0
  %149 = vmatpush2.msra.mxu0 %v77
  %150 = vmatprep.subr.mxu0 0.0
  %151 = vmatpush2.msra.mxu0 %v76
  %152 = vmatprep.subr.mxu0 0.0
  %153 = vmatpush2.msra.mxu0 %v75
  %154 = vmatprep.subr.mxu0 0.0
  %155 = vmatpush2.msra.mxu0 %v74
  %156 = vmatprep.subr.mxu0 0.0
  %157 = vmatpush2.msra.mxu0 %v73
  %158 = vmatprep.subr.mxu0 0.0
  %159 = vmatpush2.msra.mxu0 %v72
  %160 = vmatprep.subr.mxu0 0.0
  %161 = vmatpush2.msra.mxu0 %v71
  %162 = vmatprep.subr.mxu0 0.0
  %163 = vmatpush2.msra.mxu0 %v70
  %164 = vmatprep.subr.mxu0 0.0
  %165 = vmatpush2.msra.mxu0 %v69
  %166 = vmatprep.subr.mxu0 0.0
  %167 = vmatpush2.msra.mxu0 %v68
  %168 = vmatprep.subr.mxu0 0.0
  %169 = vmatpush2.msra.mxu0 %v67
  %170 = vmatprep.subr.mxu0 0.0
  %171 = vmatpush2.msra.mxu0 %v66
  %172 = vmatprep.subr.mxu0 0.0
  %173 = vmatpush2.msra.mxu0 %v65
  %174 = vmatprep.subr.mxu0 0.0
  %175 = vmatpush2.msra.mxu0 %v64
  %176 = vmatprep.mubr.f32.mxu0 %v44
  %177 = vmatmul.mubr.f32.gmra.mxu0 %v43
  %v178 = vpop.f32.mrf.mxu0
  %v179 = vadd.f32 0.0, %v178
  %v180 = vpop.f32.mrf.mxu0
  %181 = vdwg.mxu0
  %182 = vmatprep.subr.mxu0 0.0
  %183 = vmatpush1.msra.mxu0 %v95
  %184 = vmatprep.subr.mxu0 0.0
  %185 = vmatpush1.msra.mxu0 %v94
  %186 = vmatprep.subr.mxu0 0.0
  %187 = vmatpush1.msra.mxu0 %v93
  %188 = vmatprep.subr.mxu0 0.0
  %189 = vmatpush1.msra.mxu0 %v92
  %190 = vmatprep.subr.mxu0 0.0
  %191 = vmatpush1.msra.mxu0 %v91
  %192 = vmatprep.subr.mxu0 0.0
  %193 = vmatpush1.msra.mxu0 %v90
  %194 = vmatprep.subr.mxu0 0.0
  %195 = vmatpush1.msra.mxu0 %v89
  %196 = vmatprep.subr.mxu0 0.0
  %197 = vmatpush1.msra.mxu0 %v88
  %198 = vmatprep.subr.mxu0 0.0
  %199 = vmatpush1.msra.mxu0 %v87
  %200 = vmatprep.subr.mxu0 0.0
  %201 = vmatpush1.msra.mxu0 %v86
  %202 = vmatprep.subr.mxu0 0.0
  %203 = vmatpush1.msra.mxu0 %v85
  %204 = vmatprep.subr.mxu0 0.0
  %205 = vmatpush1.msra.mxu0 %v84
  %206 = vmatprep.subr.mxu0 0.0
  %207 = vmatpush1.msra.mxu0 %v83
  %208 = vmatprep.subr.mxu0 0.0
  %209 = vmatpush1.msra.mxu0 %v82
  %210 = vmatprep.subr.mxu0 0.0
  %211 = vmatpush1.msra.mxu0 %v81
  %212 = vmatprep.subr.mxu0 0.0
  %213 = vmatpush1.msra.mxu0 %v80
  %214 = vmatprep.subr.mxu0 0.0
  %215 = vmatpush2.msra.mxu0 %v111
  %216 = vmatprep.subr.mxu0 0.0
  %217 = vmatpush2.msra.mxu0 %v110
  %218 = vmatprep.subr.mxu0 0.0
  %219 = vmatpush2.msra.mxu0 %v109
  %220 = vmatprep.subr.mxu0 0.0
  %221 = vmatpush2.msra.mxu0 %v108
  %222 = vmatprep.subr.mxu0 0.0
  %223 = vmatpush2.msra.mxu0 %v107
  %224 = vmatprep.subr.mxu0 0.0
  %225 = vmatpush2.msra.mxu0 %v106
  %226 = vmatprep.subr.mxu0 0.0
  %227 = vmatpush2.msra.mxu0 %v105
  %228 = vmatprep.subr.mxu0 0.0
  %229 = vmatpush2.msra.mxu0 %v104
  %230 = vmatprep.subr.mxu0 0.0
  %231 = vmatpush2.msra.mxu0 %v103
  %232 = vmatprep.subr.mxu0 0.0
  %233 = vmatpush2.msra.mxu0 %v102
  %234 = vmatprep.subr.mxu0 0.0
  %235 = vmatpush2.msra.mxu0 %v101
  %236 = vmatprep.subr.mxu0 0.0
  %237 = vmatpush2.msra.mxu0 %v100
  %238 = vmatprep.subr.mxu0 0.0
  %239 = vmatpush2.msra.mxu0 %v99
  %240 = vmatprep.subr.mxu0 0.0
  %241 = vmatpush2.msra.mxu0 %v98
  %242 = vmatprep.subr.mxu0 0.0
  %243 = vmatpush2.msra.mxu0 %v97
  %244 = vmatprep.subr.mxu0 0.0
  %245 = vmatpush2.msra.mxu0 %v96
  %246 = vmatprep.mubr.f32.mxu0 %v46
  %247 = vmatmul.mubr.f32.gmra.mxu0 %v45
  %v248 = vpop.f32.mrf.mxu0
  %v249 = vadd.f32 %v179, %v248
  %v250 = vpop.f32.mrf.mxu0
  %251 = vdwg.mxu0
  %v252 = vadd.f32 %v47, %v249
  %253 = vst [vmem:[%s2] sm:$0xff] %v252
  // Predicated region
  $region14: #{graph_aggregator.2} parent=0 // pred_check
    _
  $region15: #{graph_aggregator.2} parent=0 // pred_check_branch
    %255 = sbr.rel (0) target = $region17
  $region16: #{graph_aggregator.2} parent=0 // pred_region
    _
  $region17: #{graph_aggregator.2} parent=0 // pred_fallthru
    _
  // Predicated region
  $region18: #{graph_aggregator.2} parent=0 // pred_check
    _
  $region19: #{graph_aggregator.2} parent=0 // pred_check_branch
    %257 = sbr.rel (0) target = $region21
  $region20: #{graph_aggregator.2} parent=0 // pred_region
    _
  $region21: #{graph_aggregator.2} parent=0 // pred_fallthru
    _

</llo_original>
